<compile_context>
chip_gen: v7x
topology: tpu7x:2x2x1
jax: 0.10.0
libtpu: 0.0.40
codegen_flags: <defaults>
</compile_context>

<pallas_src>
import math

import jax
import jax.numpy as jnp
import numpy as np
from jax.experimental import pallas as pl
from jax.experimental.pallas import tpu as pltpu


def _round_up(x, m):
    return ((x + m - 1) // m) * m


# ---------------------------------------------------------------------------
# Kernel 1: fused  y = log_softmax(x @ W^T, axis=-1)   (tgt_word_prj path)
#
# grid = (row_tiles, vocab_tiles); vocab axis last ("arbitrary").
# x block      : (tm, D)      index (i, 0)   (bf16, re-used across vocab tiles)
# wT block     : (D, tv)      index (0, j)   (bf16, streamed / double-buffered)
# out block    : (tm, V_pad)  index (i, 0)   (resident row strip, f32)
# scratch      : running max m (tm,1) f32, running sum l (tm,1) f32
# ---------------------------------------------------------------------------
def _make_proj_logsoftmax_kernel(v_true, v_pad, v_tile):
    needs_mask = (v_pad != v_true)

    def kernel(x_ref, w_ref, o_ref, m_ref, l_ref):
        jv = pl.program_id(1)
        nv = pl.num_programs(1)

        @pl.when(jv == 0)
        def _():
            m_ref[...] = jnp.full_like(m_ref, -jnp.inf)
            l_ref[...] = jnp.zeros_like(l_ref)

        # bf16 x bf16 -> f32 accumulation on the MXU, no in-kernel transpose.
        s = jnp.dot(x_ref[...], w_ref[...],
                    preferred_element_type=jnp.float32)          # (tm, tv)

        if needs_mask:
            col = jv * v_tile + jax.lax.broadcasted_iota(
                jnp.int32, (1, v_tile), 1)
            s_stats = jnp.where(col < v_true, s, -1e30)
        else:
            s_stats = s

        # online logsumexp update
        m_prev = m_ref[...]
        m_new = jnp.maximum(m_prev, jnp.max(s_stats, axis=-1, keepdims=True))
        l_ref[...] = (l_ref[...] * jnp.exp(m_prev - m_new)
                      + jnp.sum(jnp.exp(s_stats - m_new), axis=-1,
                                keepdims=True))
        m_ref[...] = m_new

        # stash raw logits into the resident output strip
        col0 = pl.multiple_of(jv * v_tile, v_tile)
        o_ref[:, pl.ds(col0, v_tile)] = s.astype(o_ref.dtype)

        @pl.when(jv == nv - 1)
        def _():
            lse = m_ref[...] + jnp.log(l_ref[...])
            o_ref[...] = (o_ref[...].astype(jnp.float32) - lse).astype(o_ref.dtype)

    return kernel


def tgt_word_prj_logsoftmax(x, weight_t, *, row_tile=256, vocab_tile=2048):
    """x: (..., D) float; weight_t: (D, V) pre-transposed projection weight.

    Returns log_softmax(x @ W^T, axis=-1) with shape (..., V), float32.
    """
    orig_shape = x.shape
    d = orig_shape[-1]
    x2 = x.reshape(-1, d)
    n = x2.shape[0]
    v = weight_t.shape[1]

    tm = min(row_tile, _round_up(n, 8))
    n_pad = _round_up(n, tm)
    tv = min(vocab_tile, _round_up(v, 128))
    v_pad = _round_up(v, tv)

    x2 = x2.astype(jnp.bfloat16)
    if n_pad != n:
        x2 = jnp.pad(x2, ((0, n_pad - n), (0, 0)))
    w = weight_t.astype(jnp.bfloat16)
    if v_pad != v:
        w = jnp.pad(w, ((0, 0), (0, v_pad - v)))

    out = pl.pallas_call(
        _make_proj_logsoftmax_kernel(v, v_pad, tv),
        out_shape=jax.ShapeDtypeStruct((n_pad, v_pad), jnp.float32),
        grid_spec=pltpu.PrefetchScalarGridSpec(
            num_scalar_prefetch=0,
            grid=(pl.cdiv(n_pad, tm), pl.cdiv(v_pad, tv)),
            in_specs=[
                pl.BlockSpec((tm, d), lambda i, j: (i, 0)),
                pl.BlockSpec((d, tv), lambda i, j: (0, j)),
            ],
            out_specs=pl.BlockSpec((tm, v_pad), lambda i, j: (i, 0)),
            scratch_shapes=[
                pltpu.VMEM((tm, 1), jnp.float32),   # running max
                pltpu.VMEM((tm, 1), jnp.float32),   # running sum
            ],
        ),
        compiler_params=pltpu.CompilerParams(
            dimension_semantics=("parallel", "arbitrary"),
            vmem_limit_bytes=64 * 1024 * 1024),
    )(x2, w)

    out = out[:n, :v]
    return out.reshape(*orig_shape[:-1], v)


# ---------------------------------------------------------------------------
# Kernel 2 (fused Feat2Emb):  for each chunk c:
#     l2norm( mean_t(feats[c]) @ W_c^T + b_c )
#
# grid = (chunk, T_tiles); T axis last ("arbitrary").
# feats block  : (1, B, tT, F) index (c, 0, t, 0)   (streamed over T)
# wT block     : (1, F, O)     index (c, 0, 0)
# bias block   : (1, 1, O)     index (c, 0, 0)
# out block    : (1, B, O)     index (c, 0, 0)
# scratch      : (B, F) f32 running time-sum
# ---------------------------------------------------------------------------
def _make_feat2emb_kernel(t_true):
    inv_t = 1.0 / float(t_true)
    eps = 1e-24   # on the squared norm ~ F.normalize's eps=1e-12 on the norm

    def kernel(f_ref, w_ref, b_ref, o_ref, acc_ref):
        ti = pl.program_id(1)

        @pl.when(ti == 0)
        def _():
            acc_ref[...] = jnp.zeros_like(acc_ref)

        # sum over this time tile (zero padding along T is harmless)
        acc_ref[...] += jnp.sum(f_ref[0].astype(jnp.float32), axis=1)

        @pl.when(ti == pl.num_programs(1) - 1)
        def _():
            mean = acc_ref[...] * inv_t                              # (B, F)
            y = jnp.dot(mean, w_ref[0],
                        preferred_element_type=jnp.float32)          # (B, O)
            y = y + b_ref[0]
            ssq = jnp.sum(y * y, axis=1, keepdims=True)
            o_ref[0] = (y * jax.lax.rsqrt(ssq + eps)).astype(o_ref.dtype)

    return kernel


def feat2emb_fused(feats, w_t, bias, *, t_tile=128):
    """feats: (C, B, T, F); w_t: (C, F, O); bias: (C, O).  Returns (C, B, O)."""
    c, b, t, f = feats.shape
    o = w_t.shape[-1]

    tt = min(t_tile, _round_up(t, 8))
    t_pad = _round_up(t, tt)
    if t_pad != t:
        feats = jnp.pad(feats, ((0, 0), (0, 0), (0, t_pad - t), (0, 0)))

    bias3 = bias.reshape(c, 1, o)

    return pl.pallas_call(
        _make_feat2emb_kernel(t),
        out_shape=jax.ShapeDtypeStruct((c, b, o), jnp.float32),
        grid_spec=pltpu.PrefetchScalarGridSpec(
            num_scalar_prefetch=0,
            grid=(c, pl.cdiv(t_pad, tt)),
            in_specs=[
                pl.BlockSpec((1, b, tt, f), lambda ci, ti: (ci, 0, ti, 0)),
                pl.BlockSpec((1, f, o), lambda ci, ti: (ci, 0, 0)),
                pl.BlockSpec((1, 1, o), lambda ci, ti: (ci, 0, 0)),
            ],
            out_specs=pl.BlockSpec((1, b, o), lambda ci, ti: (ci, 0, 0)),
            scratch_shapes=[pltpu.VMEM((b, f), jnp.float32)],
        ),
        compiler_params=pltpu.CompilerParams(
            dimension_semantics=("parallel", "arbitrary"),
            vmem_limit_bytes=64 * 1024 * 1024),
    )(feats, w_t, bias3)


# ---------------------------------------------------------------------------
# Parameter init (deterministic, matching nn.init.xavier_normal_ semantics)
# ---------------------------------------------------------------------------
def xavier_normal(key, out_features, in_features):
    std = math.sqrt(2.0 / (in_features + out_features))
    return std * jax.random.normal(key, (out_features, in_features), jnp.float32)


class Feat2EmbPallas:
    """Mirror of Feat2Emb: `chunk` Linear(in_size, out_size) heads + l2norm.

    All chunks run in a single fused pallas_call (chunk axis in the grid)."""

    def __init__(self, key, in_size, out_size, chunk=1, c=True):
        keys = jax.random.split(key, 2 * chunk)
        ws = [xavier_normal(keys[2 * i], out_size, in_size) for i in range(chunk)]
        # nn.Linear default bias init: U(-1/sqrt(fan_in), 1/sqrt(fan_in))
        bound = 1.0 / math.sqrt(in_size)
        bs = [jax.random.uniform(keys[2 * i + 1], (out_size,), jnp.float32,
                                 -bound, bound) for i in range(chunk)]
        # Pre-transposed (in, out) stacked along chunk -> no in-kernel transpose.
        self.w_t = jnp.stack([w.T for w in ws], axis=0)     # (C, in, out)
        self.bias = jnp.stack(bs, axis=0)                   # (C, out)
        self.chunk = chunk
        self.c = c

    def __call__(self, feats):
        if self.chunk > 1:
            if self.c:
                assert feats.ndim == 3
                feats = jnp.split(feats, self.chunk, axis=1)
            assert isinstance(feats, (list, tuple))
        else:
            if not isinstance(feats, (list, tuple)):
                feats = [feats]
        # 2-D inputs (already time-pooled) get a unit time axis (mean == identity).
        feats = [f if f.ndim == 3 else f[:, None, :] for f in feats]
        stacked = jnp.stack(feats, axis=0)                  # (C, B, T, F)
        out = feat2emb_fused(stacked, self.w_t, self.bias)  # (C, B, O)
        return [out[i] for i in range(self.chunk)]


class Seq2SeqPallas:
    """Concrete-compute subset of Seq2Seq (ARFormer-style path)."""

    def __init__(self, key, dim_word, vocab_size, triplet=True):
        k1, k2, k3 = jax.random.split(key, 3)
        # decoder.embedding has no 'linear' attr here -> fresh xavier Linear, no bias.
        # Store pre-transposed (D, V) + bf16: lane-dense output, bf16 MXU operands.
        w = xavier_normal(k1, vocab_size, dim_word)          # (V, D) torch layout
        self.tgt_word_prj_wT = w.T.astype(jnp.bfloat16)      # (D, V)
        self.triplet = triplet
        if triplet:
            self.v2e = Feat2EmbPallas(k2, 512, 512, chunk=2, c=False)
            self.t2e = Feat2EmbPallas(k3, 768, 512, chunk=1, c=True)

    def forward_ARFormer(self, seq_probs, pred_embs_list, bert_embs):
        # TODO(synk): self.encode(feats) / self.decoder(...) are external modules;
        # seq_probs / pred_embs stand in for their outputs.
        log_probs = tgt_word_prj_logsoftmax(seq_probs, self.tgt_word_prj_wT)
        results = {"seq_probs": log_probs, "pred_embs": pred_embs_list,
                   "bert_embs": bert_embs}
        if self.triplet:
            results["triplet"] = [self.v2e(pred_embs_list), self.t2e(bert_embs)]
        return results


# ---------------------------------------------------------------------------
# Reference (plain jnp) for correctness checking
# ---------------------------------------------------------------------------
def _ref_logsoftmax_proj(x, w_t):
    # Mirror the kernel's bf16 quantization of the operands; accumulate in f32.
    xs = x.astype(jnp.bfloat16).astype(jnp.float32)
    ws = w_t.astype(jnp.float32)
    return jax.nn.log_softmax(xs @ ws, axis=-1)


def _ref_feat2emb(feats, w_t, b):
    m = feats.mean(axis=1)
    y = m @ w_t + b
    return y / jnp.sqrt(jnp.sum(y * y, axis=1, keepdims=True))


if __name__ == "__main__":
    key = jax.random.PRNGKey(0)
    k_model, k_x, k_e1, k_e2, k_bert = jax.random.split(key, 5)

    B, T = 2, 8
    dim_word, vocab_size = 128, 512

    model = Seq2SeqPallas(k_model, dim_word, vocab_size, triplet=True)

    # synthetic decoder outputs (stand-ins for external decoder module)
    seq_probs = jax.random.normal(k_x, (B, T, dim_word), jnp.float32)
    pred_embs = [jax.random.normal(k_e1, (B, T, 512), jnp.float32),
                 jax.random.normal(k_e2, (B, T, 512), jnp.float32)]
    bert_embs = jax.random.normal(k_bert, (B, T, 768), jnp.float32)

    out = model.forward_ARFormer(seq_probs, pred_embs, bert_embs)
    jax.block_until_ready(out)

    # --- verify against pure-JAX reference ---
    ref_lp = _ref_logsoftmax_proj(seq_probs.reshape(-1, dim_word),
                                  model.tgt_word_prj_wT).reshape(B, T, vocab_size)
    np.testing.assert_allclose(np.asarray(out["seq_probs"]), np.asarray(ref_lp),
                               rtol=1e-4, atol=1e-4)

    for i in range(2):
        ref_v = _ref_feat2emb(pred_embs[i], model.v2e.w_t[i], model.v2e.bias[i])
        np.testing.assert_allclose(np.asarray(out["triplet"][0][i]),
                                   np.asarray(ref_v), rtol=1e-5, atol=1e-5)

    ref_t = _ref_feat2emb(bert_embs, model.t2e.w_t[0], model.t2e.bias[0])
    np.testing.assert_allclose(np.asarray(out["triplet"][1][0]),
                               np.asarray(ref_t), rtol=1e-5, atol=1e-5)

    print("KERNEL_OK")
</pallas_src>

<mosaic_0001>
module attributes {stable_mosaic.version = 11 : i64} {
  func.func @kernel(%arg0: i32, %arg1: i32, %arg2: memref<16x128xbf16, #tpu.memory_space<vmem>>, %arg3: memref<128x512xbf16, #tpu.memory_space<vmem>>, %arg4: memref<16x512xf32, #tpu.memory_space<vmem>>, %arg5: memref<16x1xf32, #tpu.memory_space<vmem>>, %arg6: memref<16x1xf32, #tpu.memory_space<vmem>>) attributes {dimension_semantics = [#tpu.dimension_semantics<parallel>, #tpu.dimension_semantics<arbitrary>], iteration_bounds = array<i64: 1, 1>, scalar_prefetch = 0 : i64, scratch_operands = 2 : i64, tpu.core_type = #tpu.core_type<tc>, window_params = [{transform_indices = @transform_0, window_bounds = array<i64: 16, 128>}, {transform_indices = @transform_1, window_bounds = array<i64: 128, 512>}, {transform_indices = @transform_2, window_bounds = array<i64: 16, 512>}]} {
    %c0_i32 = arith.constant 0 : i32
    %0 = arith.cmpi eq, %arg1, %c0_i32 : i32
    %1 = arith.extui %0 : i1 to i32
    %c0_i32_0 = arith.constant 0 : i32
    %2 = arith.cmpi ne, %1, %c0_i32_0 : i32
    scf.if %2 {
      %cst_17 = arith.constant 0xFF800000 : f32
      %29 = vector.broadcast %cst_17 : f32 to vector<16x1xf32>
      %c0_18 = arith.constant 0 : index
      %c0_19 = arith.constant 0 : index
      %30 = vector.load %arg5[%c0_18, %c0_19] : memref<16x1xf32, #tpu.memory_space<vmem>>, vector<16x1xf32>
      tpu.vector_store %arg5[%c0_18, %c0_19], %29 {strides = array<i32>} : memref<16x1xf32, #tpu.memory_space<vmem>>, vector<16x1xf32>,
      %cst_20 = arith.constant 0.000000e+00 : f32
      %31 = vector.broadcast %cst_20 : f32 to vector<16x1xf32>
      %c0_21 = arith.constant 0 : index
      %c0_22 = arith.constant 0 : index
      %32 = vector.load %arg6[%c0_21, %c0_22] : memref<16x1xf32, #tpu.memory_space<vmem>>, vector<16x1xf32>
      tpu.vector_store %arg6[%c0_21, %c0_22], %31 {strides = array<i32>} : memref<16x1xf32, #tpu.memory_space<vmem>>, vector<16x1xf32>,
    } else {
    }
    %c0 = arith.constant 0 : index
    %c0_1 = arith.constant 0 : index
    %3 = vector.load %arg2[%c0, %c0_1] : memref<16x128xbf16, #tpu.memory_space<vmem>>, vector<16x128xbf16>
    %c0_2 = arith.constant 0 : index
    %c0_3 = arith.constant 0 : index
    %4 = vector.load %arg3[%c0_2, %c0_3] : memref<128x512xbf16, #tpu.memory_space<vmem>>, vector<128x512xbf16>
    %cst = arith.constant dense<0.000000e+00> : vector<16x512xf32>
    %5 = tpu.matmul %3, %4, %cst {dimension_numbers = #tpu.dot_dimension_numbers<[1], [0], [0], [1], [0, 0, 1, 1], [], []>} : vector<16x128xbf16>, vector<128x512xbf16>, vector<16x512xf32> -> vector<16x512xf32>
    %c0_4 = arith.constant 0 : index
    %c0_5 = arith.constant 0 : index
    %6 = vector.load %arg5[%c0_4, %c0_5] : memref<16x1xf32, #tpu.memory_space<vmem>>, vector<16x1xf32>
    %cst_6 = arith.constant dense<0xFF800000> : vector<16xf32>
    %7 = vector.multi_reduction <maximumf>, %5, %cst_6 [1] : vector<16x512xf32> to vector<16xf32>
    %8 = vector.shape_cast %7 : vector<16xf32> to vector<16x1xf32>
    %9 = arith.maximumf %6, %8 : vector<16x1xf32>
    %c0_7 = arith.constant 0 : index
    %c0_8 = arith.constant 0 : index
    %10 = vector.load %arg6[%c0_7, %c0_8] : memref<16x1xf32, #tpu.memory_space<vmem>>, vector<16x1xf32>
    %11 = arith.subf %6, %9 : vector<16x1xf32>
    %12 = math.exp %11 : vector<16x1xf32>
    %13 = arith.mulf %10, %12 : vector<16x1xf32>
    %14 = vector.broadcast %9 : vector<16x1xf32> to vector<16x512xf32>
    %15 = arith.subf %5, %14 : vector<16x512xf32>
    %16 = math.exp %15 : vector<16x512xf32>
    %cst_9 = arith.constant dense<0.000000e+00> : vector<16xf32>
    %17 = vector.multi_reduction <add>, %16, %cst_9 [1] : vector<16x512xf32> to vector<16xf32>
    %18 = vector.shape_cast %17 : vector<16xf32> to vector<16x1xf32>
    %19 = arith.addf %13, %18 : vector<16x1xf32>
    %c0_10 = arith.constant 0 : index
    %c0_11 = arith.constant 0 : index
    %20 = vector.load %arg6[%c0_10, %c0_11] : memref<16x1xf32, #tpu.memory_space<vmem>>, vector<16x1xf32>
    tpu.vector_store %arg6[%c0_10, %c0_11], %19 {strides = array<i32>} : memref<16x1xf32, #tpu.memory_space<vmem>>, vector<16x1xf32>,
    %c0_12 = arith.constant 0 : index
    %c0_13 = arith.constant 0 : index
    %21 = vector.load %arg5[%c0_12, %c0_13] : memref<16x1xf32, #tpu.memory_space<vmem>>, vector<16x1xf32>
    tpu.vector_store %arg5[%c0_12, %c0_13], %9 {strides = array<i32>} : memref<16x1xf32, #tpu.memory_space<vmem>>, vector<16x1xf32>,
    %c512_i32 = arith.constant 512 : i32
    %22 = arith.muli %arg1, %c512_i32 : i32
    %23 = tpu.assume_multiple %22, 512 : i32
    %c0_14 = arith.constant 0 : index
    %24 = arith.index_cast %23 : i32 to index
    %25 = vector.load %arg4[%c0_14, %24] : memref<16x512xf32, #tpu.memory_space<vmem>>, vector<16x512xf32>
    tpu.vector_store %arg4[%c0_14, %24], %5 {strides = array<i32>} : memref<16x512xf32, #tpu.memory_space<vmem>>, vector<16x512xf32>,
    %c0_i32_15 = arith.constant 0 : i32
    %26 = arith.cmpi eq, %arg1, %c0_i32_15 : i32
    %27 = arith.extui %26 : i1 to i32
    %c0_i32_16 = arith.constant 0 : i32
    %28 = arith.cmpi ne, %27, %c0_i32_16 : i32
    scf.if %28 {
      %c0_17 = arith.constant 0 : index
      %c0_18 = arith.constant 0 : index
      %29 = vector.load %arg5[%c0_17, %c0_18] : memref<16x1xf32, #tpu.memory_space<vmem>>, vector<16x1xf32>
      %c0_19 = arith.constant 0 : index
      %c0_20 = arith.constant 0 : index
      %30 = vector.load %arg6[%c0_19, %c0_20] : memref<16x1xf32, #tpu.memory_space<vmem>>, vector<16x1xf32>
      %31 = math.log %30 : vector<16x1xf32>
      %32 = arith.addf %29, %31 : vector<16x1xf32>
      %c0_21 = arith.constant 0 : index
      %c0_22 = arith.constant 0 : index
      %33 = vector.load %arg4[%c0_21, %c0_22] : memref<16x512xf32, #tpu.memory_space<vmem>>, vector<16x512xf32>
      %34 = vector.broadcast %32 : vector<16x1xf32> to vector<16x512xf32>
      %35 = arith.subf %33, %34 : vector<16x512xf32>
      %c0_23 = arith.constant 0 : index
      %c0_24 = arith.constant 0 : index
      %36 = vector.load %arg4[%c0_23, %c0_24] : memref<16x512xf32, #tpu.memory_space<vmem>>, vector<16x512xf32>
      tpu.vector_store %arg4[%c0_23, %c0_24], %35 {strides = array<i32>} : memref<16x512xf32, #tpu.memory_space<vmem>>, vector<16x512xf32>,
    } else {
    }
    return
  }
  func.func @transform_0(%arg0: i32, %arg1: i32) -> (i32, i32) {
    %c0_i32 = arith.constant 0 : i32
    %c0_i32_0 = arith.constant 0 : i32
    return %arg0, %c0_i32 : i32, i32
  }
  func.func @transform_1(%arg0: i32, %arg1: i32) -> (i32, i32) {
    %c0_i32 = arith.constant 0 : i32
    %c0_i32_0 = arith.constant 0 : i32
    return %c0_i32, %arg1 : i32, i32
  }
  func.func @transform_2(%arg0: i32, %arg1: i32) -> (i32, i32) {
    %c0_i32 = arith.constant 0 : i32
    %c0_i32_0 = arith.constant 0 : i32
    return %arg0, %c0_i32 : i32, i32
  }
}

</mosaic_0001>

<llo_original>
// kernel: tpu_custom_call.1
$region0: #{tpu_custom_call.1}
  #allocation0 [shape = 'u32[]', space=smem, size = 0x4, offset = 0x4, fixed_abs, tag = 'smem constant byte address 0x4 - core index']
  #allocation1 [shape = 'u32[144,128]{1,0:T(1,128)}', space=vmem, size = 0x12000, scoped, tag = 'internal scratch']
  #allocation2 [shape = 'f32[16,1]{1,0:T(8,128)}', space=vmem, size = 0x2000, scoped, tag = 'scratch operand']
  #allocation3 [shape = 'f32[16,1]{1,0:T(8,128)}', space=vmem, size = 0x2000, scoped, tag = 'scratch operand']
  %s0 = inlined_call_operand.hbm [shape: bf16[16,128], index: 0, kind: input, shape index: {}]
  %s1 = inlined_call_operand.hbm [shape: bf16[128,512], index: 1, kind: input, shape index: {}]
  %s2 = inlined_call_operand.hbm [shape: f32[16,512], index: 2, kind: output, shape index: {}]
  %s3 = sld [smem:[#allocation0]]
  $region34: #{tpu_custom_call.1} parent=0
    _
  %s5 = ssub.s32 1, %s3
  %s6 = scalar_select 0, %s5, %s3
  $region1: #{tpu_custom_call.1} parent=0
    #allocation4 [shape = 'u8[4096]{0}', space=vmem, size = 0x1000, scoped, tag = 'input window, operand 0, single buffered']
    #allocation5 [shape = 's32[1]{0}', space=sflag, size = 0x4, scoped, tag = 'scoped memory for tpu_custom_call.1']
    #allocation6 [shape = 's32[1]{0}', space=sflag, size = 0x4, scoped, tag = 'scoped memory for tpu_custom_call.1']
    #allocation7 [shape = 'u8[131072]{0}', space=vmem, size = 0x20000, scoped, tag = 'input window, operand 1, single buffered']
    #allocation8 [shape = 's32[1]{0}', space=sflag, size = 0x4, scoped, tag = 'scoped memory for tpu_custom_call.1']
    #allocation9 [shape = 'u8[32768]{0}', space=vmem, size = 0x8000, scoped, tag = 'output window, operand 0, single buffered']
    %7 = vsyncpa [#allocation5], 0
    %8 = vsyncpa [#allocation8], 0
    %9 = vsyncpa [#allocation6], 0
    // Predicated region
    $region2: #{tpu_custom_call.1} parent=1 // pred_check
      _
    $region3: #{tpu_custom_call.1} parent=1 // pred_check_branch
      %11 = sbr.rel (0) target = $region5
    $region4: #{tpu_custom_call.1} parent=1 // pred_region
      %s13 = ssub.s32 128, 128
      %14 = vsyncadd [#allocation5], %s13
      %s15 = sshll.u32 [#allocation4], 4
      %s16 = int_to_ptr.vmem [resolvable:$true] %s15
      %21 = dma.hbm_to_vmem [thread:$0]  %s0, 128, %s16, [#allocation5], 64, 64, 4
    $region5: #{tpu_custom_call.1} parent=1 // pred_fallthru
      _
    // Predicated region
    $region6: #{tpu_custom_call.1} parent=1 // pred_check
      _
    $region7: #{tpu_custom_call.1} parent=1 // pred_check_branch
      %23 = sbr.rel (0) target = $region9
    $region8: #{tpu_custom_call.1} parent=1 // pred_region
      %s25 = ssub.s32 4096, 4096
      %26 = vsyncadd [#allocation8], %s25
      %s27 = sshll.u32 [#allocation7], 4
      %s28 = int_to_ptr.vmem [resolvable:$true] %s27
      %33 = dma.hbm_to_vmem [thread:$0]  %s1, 4096, %s28, [#allocation8], 256, 256, 16
    $region9: #{tpu_custom_call.1} parent=1 // pred_fallthru
      _
    // Predicated region
    $region10: #{tpu_custom_call.1} parent=1 // pred_check
      _
    $region11: #{tpu_custom_call.1} parent=1 // pred_check_branch
      %35 = sbr.rel (0) target = $region13
    $region12: #{tpu_custom_call.1} parent=1 // pred_region
      %36 = dma.done [#allocation5], 128
    $region13: #{tpu_custom_call.1} parent=1 // pred_fallthru
      _
    // Predicated region
    $region14: #{tpu_custom_call.1} parent=1 // pred_check
      _
    $region15: #{tpu_custom_call.1} parent=1 // pred_check_branch
      %38 = sbr.rel (0) target = $region17
    $region16: #{tpu_custom_call.1} parent=1 // pred_region
      %39 = dma.done [#allocation8], 4096
    $region17: #{tpu_custom_call.1} parent=1 // pred_fallthru
      _
    %p41 = scmp.eq.s32.totalorder 0, 0
    // Predicated region
    $region18: #{tpu_custom_call.1} parent=1 // pred_check
      %p42 = pneg %p41
    $region19: #{tpu_custom_call.1} parent=1 // pred_check_branch
      %44 = sbr.rel (%p42) target = $region21
    $region20: #{tpu_custom_call.1} parent=1 // pred_region
      %vm45 = vcmask 7168
      %46 = vst.msk [vmem:[#allocation2] sm:$0xff] %vm45, -inf
      %47 = vst.msk [vmem:[#allocation2 + $0x8] sm:$0xff] %vm45, -inf
      %48 = vst.msk [vmem:[#allocation3] sm:$0xff] %vm45, 0.0
      %49 = vst.msk [vmem:[#allocation3 + $0x8] sm:$0xff] %vm45, 0.0
    $region21: #{tpu_custom_call.1} parent=1 // pred_fallthru
      _
    %v50 = vld [vmem:[#allocation4] sm:$0xf]
    %v51 = vld [vmem:[#allocation4 + $0x4] sm:$0xf]
    %v52 = vld [vmem:[#allocation7] sm:$0xff]
    %v53 = vld [vmem:[#allocation7 + $0x8] sm:$0xff]
    %v54 = vld [vmem:[#allocation7 + $0x10] sm:$0xff]
    %v55 = vld [vmem:[#allocation7 + $0x18] sm:$0xff]
    %v56 = vld [vmem:[#allocation7 + $0x20] sm:$0xff]
    %v57 = vld [vmem:[#allocation7 + $0x28] sm:$0xff]
    %v58 = vld [vmem:[#allocation7 + $0x30] sm:$0xff]
    %v59 = vld [vmem:[#allocation7 + $0x38] sm:$0xff]
    %v60 = vld [vmem:[#allocation7 + $0x40] sm:$0xff]
    %v61 = vld [vmem:[#allocation7 + $0x48] sm:$0xff]
    %v62 = vld [vmem:[#allocation7 + $0x50] sm:$0xff]
    %v63 = vld [vmem:[#allocation7 + $0x58] sm:$0xff]
    %v64 = vld [vmem:[#allocation7 + $0x60] sm:$0xff]
    %v65 = vld [vmem:[#allocation7 + $0x68] sm:$0xff]
    %v66 = vld [vmem:[#allocation7 + $0x70] sm:$0xff]
    %v67 = vld [vmem:[#allocation7 + $0x78] sm:$0xff]
    %v68 = vld [vmem:[#allocation7 + $0x80] sm:$0xff]
    %v69 = vld [vmem:[#allocation7 + $0x88] sm:$0xff]
    %v70 = vld [vmem:[#allocation7 + $0x90] sm:$0xff]
    %v71 = vld [vmem:[#allocation7 + $0x98] sm:$0xff]
    %v72 = vld [vmem:[#allocation7 + $0xa0] sm:$0xff]
    %v73 = vld [vmem:[#allocation7 + $0xa8] sm:$0xff]
    %v74 = vld [vmem:[#allocation7 + $0xb0] sm:$0xff]
    %v75 = vld [vmem:[#allocation7 + $0xb8] sm:$0xff]
    %v76 = vld [vmem:[#allocation7 + $0xc0] sm:$0xff]
    %v77 = vld [vmem:[#allocation7 + $0xc8] sm:$0xff]
    %v78 = vld [vmem:[#allocation7 + $0xd0] sm:$0xff]
    %v79 = vld [vmem:[#allocation7 + $0xd8] sm:$0xff]
    %v80 = vld [vmem:[#allocation7 + $0xe0] sm:$0xff]
    %v81 = vld [vmem:[#allocation7 + $0xe8] sm:$0xff]
    %v82 = vld [vmem:[#allocation7 + $0xf0] sm:$0xff]
    %v83 = vld [vmem:[#allocation7 + $0xf8] sm:$0xff]
    %v86 = vunpack.c.l.b16 %v50
    %v87 = vunpack.c.l.b16 %v51
    %v88 = vpack.c.b16 %v87, %v86
    %v122 = vunpack.c.l.b16 %v52
    %v123 = vunpack.c.h.b16 %v52
    %v124 = vunpack.c.l.b16 %v53
    %v125 = vunpack.c.h.b16 %v53
    %v126 = vunpack.c.l.b16 %v54
    %v127 = vunpack.c.h.b16 %v54
    %v128 = vunpack.c.l.b16 %v55
    %v129 = vunpack.c.h.b16 %v55
    %v130 = vunpack.c.l.b16 %v56
    %v131 = vunpack.c.h.b16 %v56
    %v132 = vunpack.c.l.b16 %v57
    %v133 = vunpack.c.h.b16 %v57
    %v134 = vunpack.c.l.b16 %v58
    %v135 = vunpack.c.h.b16 %v58
    %v136 = vunpack.c.l.b16 %v59
    %v137 = vunpack.c.h.b16 %v59
    %v138 = vunpack.c.l.b16 %v60
    %v139 = vunpack.c.h.b16 %v60
    %v140 = vunpack.c.l.b16 %v61
    %v141 = vunpack.c.h.b16 %v61
    %v142 = vunpack.c.l.b16 %v62
    %v143 = vunpack.c.h.b16 %v62
    %v144 = vunpack.c.l.b16 %v63
    %v145 = vunpack.c.h.b16 %v63
    %v146 = vunpack.c.l.b16 %v64
    %v147 = vunpack.c.h.b16 %v64
    %v148 = vunpack.c.l.b16 %v65
    %v149 = vunpack.c.h.b16 %v65
    %v150 = vunpack.c.l.b16 %v66
    %v151 = vunpack.c.h.b16 %v66
    %v152 = vunpack.c.l.b16 %v67
    %v153 = vunpack.c.h.b16 %v67
    %v154 = vunpack.c.l.b16 %v68
    %v155 = vunpack.c.h.b16 %v68
    %v156 = vunpack.c.l.b16 %v69
    %v157 = vunpack.c.h.b16 %v69
    %v158 = vunpack.c.l.b16 %v70
    %v159 = vunpack.c.h.b16 %v70
    %v160 = vunpack.c.l.b16 %v71
    %v161 = vunpack.c.h.b16 %v71
    %v162 = vunpack.c.l.b16 %v72
    %v163 = vunpack.c.h.b16 %v72
    %v164 = vunpack.c.l.b16 %v73
    %v165 = vunpack.c.h.b16 %v73
    %v166 = vunpack.c.l.b16 %v74
    %v167 = vunpack.c.h.b16 %v74
    %v168 = vunpack.c.l.b16 %v75
    %v169 = vunpack.c.h.b16 %v75
    %v170 = vunpack.c.l.b16 %v76
    %v171 = vunpack.c.h.b16 %v76
    %v172 = vunpack.c.l.b16 %v77
    %v173 = vunpack.c.h.b16 %v77
    %v174 = vunpack.c.l.b16 %v78
    %v175 = vunpack.c.h.b16 %v78
    %v176 = vunpack.c.l.b16 %v79
    %v177 = vunpack.c.h.b16 %v79
    %v178 = vunpack.c.l.b16 %v80
    %v179 = vunpack.c.h.b16 %v80
    %v180 = vunpack.c.l.b16 %v81
    %v181 = vunpack.c.h.b16 %v81
    %v182 = vunpack.c.l.b16 %v82
    %v183 = vunpack.c.h.b16 %v82
    %v184 = vunpack.c.l.b16 %v83
    %v185 = vunpack.c.h.b16 %v83
    %v186 = vpack.c.b16 %v126, %v122
    %v187 = vpack.c.b16 %v127, %v123
    %v188 = vpack.c.b16 %v128, %v124
    %v189 = vpack.c.b16 %v129, %v125
    %v190 = vpack.c.b16 %v134, %v130
    %v191 = vpack.c.b16 %v135, %v131
    %v192 = vpack.c.b16 %v136, %v132
    %v193 = vpack.c.b16 %v137, %v133
    %v194 = vpack.c.b16 %v142, %v138
    %v195 = vpack.c.b16 %v143, %v139
    %v196 = vpack.c.b16 %v144, %v140
    %v197 = vpack.c.b16 %v145, %v141
    %v198 = vpack.c.b16 %v150, %v146
    %v199 = vpack.c.b16 %v151, %v147
    %v200 = vpack.c.b16 %v152, %v148
    %v201 = vpack.c.b16 %v153, %v149
    %v202 = vpack.c.b16 %v158, %v154
    %v203 = vpack.c.b16 %v159, %v155
    %v204 = vpack.c.b16 %v160, %v156
    %v205 = vpack.c.b16 %v161, %v157
    %v206 = vpack.c.b16 %v166, %v162
    %v207 = vpack.c.b16 %v167, %v163
    %v208 = vpack.c.b16 %v168, %v164
    %v209 = vpack.c.b16 %v169, %v165
    %v210 = vpack.c.b16 %v174, %v170
    %v211 = vpack.c.b16 %v175, %v171
    %v212 = vpack.c.b16 %v176, %v172
    %v213 = vpack.c.b16 %v177, %v173
    %v214 = vpack.c.b16 %v182, %v178
    %v215 = vpack.c.b16 %v183, %v179
    %v216 = vpack.c.b16 %v184, %v180
    %v217 = vpack.c.b16 %v185, %v181
    %250 = vmatprep.subr.bf16.mxu0 %v187
    %251 = vmatpush1.bf16.msra.mxu0 %v186
    %252 = vmatprep.subr.bf16.mxu0 %v191
    %253 = vmatpush1.bf16.msra.mxu0 %v190
    %254 = vmatprep.subr.bf16.mxu0 %v195
    %255 = vmatpush1.bf16.msra.mxu0 %v194
    %256 = vmatprep.subr.bf16.mxu0 %v199
    %257 = vmatpush1.bf16.msra.mxu0 %v198
    %258 = vmatprep.subr.bf16.mxu0 %v203
    %259 = vmatpush1.bf16.msra.mxu0 %v202
    %260 = vmatprep.subr.bf16.mxu0 %v207
    %261 = vmatpush1.bf16.msra.mxu0 %v206
    %262 = vmatprep.subr.bf16.mxu0 %v211
    %263 = vmatpush1.bf16.msra.mxu0 %v210
    %264 = vmatprep.subr.bf16.mxu0 %v215
    %265 = vmatpush1.bf16.msra.mxu0 %v214
    %266 = vmatprep.subr.bf16.mxu0 0
    %267 = vmatpush1.bf16.msra.mxu0 0
    %268 = vmatprep.subr.bf16.mxu0 0
    %269 = vmatpush1.bf16.msra.mxu0 0
    %270 = vmatprep.subr.bf16.mxu0 0
    %271 = vmatpush1.bf16.msra.mxu0 0
    %272 = vmatprep.subr.bf16.mxu0 0
    %273 = vmatpush1.bf16.msra.mxu0 0
    %274 = vmatprep.subr.bf16.mxu0 0
    %275 = vmatpush1.bf16.msra.mxu0 0
    %276 = vmatprep.subr.bf16.mxu0 0
    %277 = vmatpush1.bf16.msra.mxu0 0
    %278 = vmatprep.subr.bf16.mxu0 0
    %279 = vmatpush1.bf16.msra.mxu0 0
    %280 = vmatprep.subr.bf16.mxu0 0
    %281 = vmatpush1.bf16.msra.mxu0 0
    %282 = vmatprep.mubr.bf16.mxu0 0
    %283 = vmatmul.mubr.bf16.gmra.mrb[0].mxu0 %v88
    %v284 = vpop.f32.mrb[0].mxu0
    %v285 = vadd.f32 0.0, %v284
    %v286 = vpop.f32.mrb[0].mxu0
    %v287 = vadd.f32 0.0, %v286
    %v288 = vpop.f32.mrb[0].mxu0
    %v289 = vadd.f32 0.0, %v288
    %v290 = vpop.f32.mrb[0].mxu0
    %v291 = vadd.f32 0.0, %v290
    %292 = vdwg.mxu0
    %293 = vmatprep.subr.bf16.mxu0 %v189
    %294 = vmatpush1.bf16.msra.mxu0 %v188
    %295 = vmatprep.subr.bf16.mxu0 %v193
    %296 = vmatpush1.bf16.msra.mxu0 %v192
    %297 = vmatprep.subr.bf16.mxu0 %v197
    %298 = vmatpush1.bf16.msra.mxu0 %v196
    %299 = vmatprep.subr.bf16.mxu0 %v201
    %300 = vmatpush1.bf16.msra.mxu0 %v200
    %301 = vmatprep.subr.bf16.mxu0 %v205
    %302 = vmatpush1.bf16.msra.mxu0 %v204
    %303 = vmatprep.subr.bf16.mxu0 %v209
    %304 = vmatpush1.bf16.msra.mxu0 %v208
    %305 = vmatprep.subr.bf16.mxu0 %v213
    %306 = vmatpush1.bf16.msra.mxu0 %v212
    %307 = vmatprep.subr.bf16.mxu0 %v217
    %308 = vmatpush1.bf16.msra.mxu0 %v216
    %309 = vmatprep.subr.bf16.mxu0 0
    %310 = vmatpush1.bf16.msra.mxu0 0
    %311 = vmatprep.subr.bf16.mxu0 0
    %312 = vmatpush1.bf16.msra.mxu0 0
    %313 = vmatprep.subr.bf16.mxu0 0
    %314 = vmatpush1.bf16.msra.mxu0 0
    %315 = vmatprep.subr.bf16.mxu0 0
    %316 = vmatpush1.bf16.msra.mxu0 0
    %317 = vmatprep.subr.bf16.mxu0 0
    %318 = vmatpush1.bf16.msra.mxu0 0
    %319 = vmatprep.subr.bf16.mxu0 0
    %320 = vmatpush1.bf16.msra.mxu0 0
    %321 = vmatprep.subr.bf16.mxu0 0
    %322 = vmatpush1.bf16.msra.mxu0 0
    %323 = vmatprep.subr.bf16.mxu0 0
    %324 = vmatpush1.bf16.msra.mxu0 0
    %325 = vmatprep.mubr.bf16.mxu0 0
    %326 = vmatmul.mubr.bf16.gmra.mrb[0].mxu0 %v88
    %v327 = vpop.f32.mrb[0].mxu0
    %v328 = vadd.f32 0.0, %v327
    %v329 = vpop.f32.mrb[0].mxu0
    %v330 = vadd.f32 0.0, %v329
    %v331 = vpop.f32.mrb[0].mxu0
    %v332 = vadd.f32 0.0, %v331
    %v333 = vpop.f32.mrb[0].mxu0
    %v334 = vadd.f32 0.0, %v333
    %335 = vdwg.mxu0
    %v336 = vld [vmem:[#allocation2] sm:$0xff]
    %v337 = vld [vmem:[#allocation2 + $0x8] sm:$0xff]
    %v338 = vmax.f32 %v285, %v328
    %v339 = vmax.f32 %v287, %v330
    %v340 = vmax.f32 %v338, %v339
    %341 = vmax.xlane.f32.xlu0 %v340
    %v342 = vpop.xlane.xlu0 %341
    %v343 = vmax.f32 %v289, %v332
    %v344 = vmax.f32 %v291, %v334
    %v345 = vmax.f32 %v343, %v344
    %346 = vmax.xlane.f32.xlu0 %v345
    %v347 = vpop.xlane.xlu0 %346
    %v348 = vmax.f32 %v336, %v342
    %v349 = vmax.f32 %v337, %v347
    %v350 = vld [vmem:[#allocation3] sm:$0xff]
    %v351 = vld [vmem:[#allocation3 + $0x8] sm:$0xff]
    %v352 = vsub.f32 %v336, %v348
    %v353 = vsub.f32 %v337, %v349
    %v354 = vmul.f32 %v352, 1.442695
    %v355 = vpow.pop %v354
    %v356 = vmul.f32 %v353, 1.442695
    %v357 = vpow.pop %v356
    %v358 = vmul.f32 %v350, %v355
    %v359 = vmul.f32 %v351, %v357
    %361 = vset.pattern.permute.xlu0 0
    %362 = vperm.xlu0 %361, %v348
    %v363 = vpop.permute.xlu0 %362
    %366 = vset.pattern.permute.xlu0 0
    %367 = vperm.xlu0 %366, %v349
    %v368 = vpop.permute.xlu0 %367
    %v370 = vsub.f32 %v285, %v363
    %v371 = vsub.f32 %v287, %v363
    %v372 = vsub.f32 %v328, %v363
    %v373 = vsub.f32 %v330, %v363
    %v374 = vsub.f32 %v289, %v368
    %v375 = vsub.f32 %v291, %v368
    %v376 = vsub.f32 %v332, %v368
    %v377 = vsub.f32 %v334, %v368
    %v378 = vmul.f32 %v370, 1.442695
    %v379 = vpow.pop %v378
    %v380 = vmul.f32 %v371, 1.442695
    %v381 = vpow.pop %v380
    %v382 = vmul.f32 %v372, 1.442695
    %v383 = vpow.pop %v382
    %v384 = vmul.f32 %v373, 1.442695
    %v385 = vpow.pop %v384
    %v386 = vmul.f32 %v374, 1.442695
    %v387 = vpow.pop %v386
    %v388 = vmul.f32 %v375, 1.442695
    %v389 = vpow.pop %v388
    %v390 = vmul.f32 %v376, 1.442695
    %v391 = vpow.pop %v390
    %v392 = vmul.f32 %v377, 1.442695
    %v393 = vpow.pop %v392
    %v394 = vadd.f32 %v379, %v381
    %v395 = vadd.f32 %v394, %v383
    %v396 = vadd.f32 %v395, %v385
    %397 = vadd.xlane.f32.xlu0 %v396
    %v398 = vpop.xlane.xlu0 %397
    %v399 = vadd.f32 %v387, %v389
    %v400 = vadd.f32 %v399, %v391
    %v401 = vadd.f32 %v400, %v393
    %402 = vadd.xlane.f32.xlu0 %v401
    %v403 = vpop.xlane.xlu0 %402
    %v404 = vadd.f32 %v358, %v398
    %v405 = vadd.f32 %v359, %v403
    %vm406 = vcmask 7168
    %407 = vst.msk [vmem:[#allocation3] sm:$0xff] %vm406, %v404
    %408 = vst.msk [vmem:[#allocation3 + $0x8] sm:$0xff] %vm406, %v405
    %409 = vst.msk [vmem:[#allocation2] sm:$0xff] %vm406, %v348
    %410 = vst.msk [vmem:[#allocation2 + $0x8] sm:$0xff] %vm406, %v349
    %s411 = smul.u32 0, 512
    %s412 = sshra.s32 %s411, 7
    %s413 = sand.u32 %s411, 127
    %s414 = smul.addr %s412, 8
    %s415 = scalar_lea.vmem [#allocation9], %s414
    %416 = vst [vmem:[%s415] sm:$0xff] %v285
    %417 = vst [vmem:[%s415 + $0x8] sm:$0xff] %v287
    %418 = vst [vmem:[%s415 + $0x10] sm:$0xff] %v328
    %419 = vst [vmem:[%s415 + $0x18] sm:$0xff] %v330
    %420 = vst [vmem:[%s415 + $0x20] sm:$0xff] %v289
    %421 = vst [vmem:[%s415 + $0x28] sm:$0xff] %v291
    %422 = vst [vmem:[%s415 + $0x30] sm:$0xff] %v332
    %423 = vst [vmem:[%s415 + $0x38] sm:$0xff] %v334
    // Predicated region
    $region22: #{tpu_custom_call.1} parent=1 // pred_check
      %p424 = pneg %p41
    $region23: #{tpu_custom_call.1} parent=1 // pred_check_branch
      %426 = sbr.rel (%p424) target = $region25
    $region24: #{tpu_custom_call.1} parent=1 // pred_region
      %v427 = vld [vmem:[#allocation2] sm:$0xff]
      %v428 = vld [vmem:[#allocation2 + $0x8] sm:$0xff]
      %v429 = vld [vmem:[#allocation3] sm:$0xff]
      %v430 = vld [vmem:[#allocation3 + $0x8] sm:$0xff]
      %v431 = vlog2.pop %v429
      %v432 = vmul.f32 %v431, 0.6931472
      %v433 = vlog2.pop %v430
      %v434 = vmul.f32 %v433, 0.6931472
      %v435 = vadd.f32 %v427, %v432
      %v436 = vadd.f32 %v428, %v434
      %v437 = vld [vmem:[#allocation9] sm:$0xff]
      %v438 = vld [vmem:[#allocation9 + $0x8] sm:$0xff]
      %v439 = vld [vmem:[#allocation9 + $0x10] sm:$0xff]
      %v440 = vld [vmem:[#allocation9 + $0x18] sm:$0xff]
      %v441 = vld [vmem:[#allocation9 + $0x20] sm:$0xff]
      %v442 = vld [vmem:[#allocation9 + $0x28] sm:$0xff]
      %v443 = vld [vmem:[#allocation9 + $0x30] sm:$0xff]
      %v444 = vld [vmem:[#allocation9 + $0x38] sm:$0xff]
      %446 = vset.pattern.permute.xlu0 0
      %447 = vperm.xlu0 %446, %v435
      %v448 = vpop.permute.xlu0 %447
      %451 = vset.pattern.permute.xlu0 0
      %452 = vperm.xlu0 %451, %v436
      %v453 = vpop.permute.xlu0 %452
      %v455 = vsub.f32 %v437, %v448
      %v456 = vsub.f32 %v438, %v448
      %v457 = vsub.f32 %v439, %v448
      %v458 = vsub.f32 %v440, %v448
      %v459 = vsub.f32 %v441, %v453
      %v460 = vsub.f32 %v442, %v453
      %v461 = vsub.f32 %v443, %v453
      %v462 = vsub.f32 %v444, %v453
      %463 = vst [vmem:[#allocation9] sm:$0xff] %v455
      %464 = vst [vmem:[#allocation9 + $0x8] sm:$0xff] %v456
      %465 = vst [vmem:[#allocation9 + $0x10] sm:$0xff] %v457
      %466 = vst [vmem:[#allocation9 + $0x18] sm:$0xff] %v458
      %467 = vst [vmem:[#allocation9 + $0x20] sm:$0xff] %v459
      %468 = vst [vmem:[#allocation9 + $0x28] sm:$0xff] %v460
      %469 = vst [vmem:[#allocation9 + $0x30] sm:$0xff] %v461
      %470 = vst [vmem:[#allocation9 + $0x38] sm:$0xff] %v462
    $region25: #{tpu_custom_call.1} parent=1 // pred_fallthru
      _
    // Predicated region
    $region26: #{tpu_custom_call.1} parent=1 // pred_check
      _
    $region27: #{tpu_custom_call.1} parent=1 // pred_check_branch
      %472 = sbr.rel (0) target = $region29
    $region28: #{tpu_custom_call.1} parent=1 // pred_region
      %s474 = ssub.s32 1024, 1024
      %475 = vsyncadd [#allocation6], %s474
      %s476 = sshll.u32 [#allocation9], 4
      %s477 = int_to_ptr.vmem [resolvable:$true] %s476
      %482 = dma.vmem_to_hbm [thread:$0]  %s477, 1024, %s2, [#allocation6], 512, 512, 32
    $region29: #{tpu_custom_call.1} parent=1 // pred_fallthru
      _
    // Predicated region
    $region30: #{tpu_custom_call.1} parent=1 // pred_check
      _
    $region31: #{tpu_custom_call.1} parent=1 // pred_check_branch
      %484 = sbr.rel (0) target = $region33
    $region32: #{tpu_custom_call.1} parent=1 // pred_region
      %485 = dma.done [#allocation6], 1024
    $region33: #{tpu_custom_call.1} parent=1 // pred_fallthru
      _
    %486 = vsyncpa [#allocation5], 1
    %487 = vsyncpa [#allocation8], 1
    %488 = vsyncpa [#allocation6], 1

</llo_original>
